<compile_context>
chip_gen: v7x
topology: tpu7x:2x2x1
jax: 0.10.0
libtpu: 0.0.40
codegen_flags: <defaults>
</compile_context>

<pallas_src>
import functools

import jax
import jax.numpy as jnp
from jax.experimental import pallas as pl
from jax.experimental.pallas import tpu as pltpu

HP = 128      # padded hidden width (50 -> 128 lanes)
MLPP = 128    # padded MLP hidden width (25 -> 128 lanes)
OUTP = 128    # padded scalar-output lane width (1 -> 128 lanes)


def _full_spec(shape):
    return pl.BlockSpec(shape, lambda: (0,) * len(shape))


def _round_up(v, m):
    return (v + m - 1) // m * m


def _pad_to(a, shape, value=0.0):
    pads = [(0, t - s) for s, t in zip(a.shape, shape)]
    return jnp.pad(a, pads, constant_values=value)


# ---------------------------------------------------------------------------
# GCNConv:  out = A_norm @ (x @ W) + b        (single fused kernel, padded lanes)
# ---------------------------------------------------------------------------
def _gcn_kernel(a_ref, x_ref, w_ref, b_ref, o_ref):
    xw = jnp.dot(x_ref[...], w_ref[...], preferred_element_type=jnp.float32)
    o_ref[...] = jnp.dot(a_ref[...], xw, preferred_element_type=jnp.float32) + b_ref[...]


def pallas_gcn(a_norm, x, w, b):
    n = x.shape[0]
    hp = w.shape[1]
    return pl.pallas_call(
        _gcn_kernel,
        out_shape=jax.ShapeDtypeStruct((n, hp), jnp.float32),
        in_specs=[_full_spec(a_norm.shape), _full_spec(x.shape),
                  _full_spec(w.shape), _full_spec(b.shape)],
        out_specs=_full_spec((n, hp)),
    )(a_norm, x, w, b)


# ---------------------------------------------------------------------------
# Fused PNA layer: message + aggregation + scalers + post_nn + lin + BN + ReLU,
# with a grid over edge tiles (reduction axis) and VMEM scratch accumulators.
# ---------------------------------------------------------------------------
def _pna_layer_kernel(gt_ref, gs_ref, sc_ref, x_ref, ds_ref,
                      wpre_ref, bpre_ref, wpost_ref, bpost_ref,
                      wlin_ref, blin_ref, bn_ref,
                      o_ref,
                      s_acc, q_acc, mn_acc, mx_acc,
                      *, minmax_chunk):
    k = pl.program_id(0)
    big = jnp.float32(1e30)

    @pl.when(k == 0)
    def _init():
        s_acc[...] = jnp.zeros_like(s_acc)
        q_acc[...] = jnp.zeros_like(q_acc)
        mn_acc[...] = jnp.full_like(mn_acc, big)
        mx_acc[...] = jnp.full_like(mx_acc, -big)

    gt = gt_ref[...]                                    # (TE, N) bf16 one-hot(target)
    gs = gs_ref[...]                                    # (TE, N) bf16 one-hot(source)
    x_bf = x_ref[...].astype(jnp.bfloat16)              # (N, HP)

    # gather endpoint features via one-hot matmuls (bf16 MXU, f32 accumulation)
    x_i = jnp.dot(gt, x_bf, preferred_element_type=jnp.float32)   # (TE, HP)
    x_j = jnp.dot(gs, x_bf, preferred_element_type=jnp.float32)   # (TE, HP)

    # pre_nn: Linear([x_i, x_j]) realised as split matmuls (no concatenate)
    msg = (jnp.dot(x_i, wpre_ref[0], preferred_element_type=jnp.float32)
           + jnp.dot(x_j, wpre_ref[1], preferred_element_type=jnp.float32)
           + bpre_ref[...])                                        # (TE, HP)

    # segment sum / sum-of-squares via scatter matmul, accumulated over edge tiles
    sc = sc_ref[...].astype(jnp.float32)                # (N, TE) scatter one-hot
    s_acc[...] += jnp.dot(sc, msg, preferred_element_type=jnp.float32)
    q_acc[...] += jnp.dot(sc, msg * msg, preferred_element_type=jnp.float32)

    # running masked min / max, sub-chunked over the edge tile to bound VMEM
    te, n = gt.shape
    hp = msg.shape[1]
    mn_run = mn_acc[...]
    mx_run = mx_acc[...]
    for c in range(0, te, minmax_chunk):
        gt_c = gt[c:c + minmax_chunk]
        msg_c = msg[c:c + minmax_chunk]
        ch = gt_c.shape[0]
        m3 = jnp.broadcast_to((gt_c > 0.5)[:, :, None], (ch, n, hp))
        v3 = jnp.broadcast_to(msg_c[:, None, :], (ch, n, hp))
        mn_run = jnp.minimum(mn_run, jnp.min(jnp.where(m3, v3, big), axis=0))
        mx_run = jnp.maximum(mx_run, jnp.max(jnp.where(m3, v3, -big), axis=0))
    mn_acc[...] = mn_run
    mx_acc[...] = mx_run

    @pl.when(k == pl.num_programs(0) - 1)
    def _finalize():
        ds = ds_ref[...]                  # (N, 4): [deg, 1/deg_c, amp, att] (hoisted)
        deg = ds[:, 0:1]
        inv_deg = ds[:, 1:2]
        amp = ds[:, 2:3]
        att = ds[:, 3:4]
        has_edge = deg > 0.0

        mean = s_acc[...] * inv_deg
        var = q_acc[...] * inv_deg - mean * mean
        std = jnp.sqrt(jnp.maximum(var, 0.0) + 1e-5)
        mn = jnp.where(has_edge, mn_acc[...], 0.0)   # PyG scatter_min -> 0 on empty
        mx = jnp.where(has_edge, mx_acc[...], 0.0)   # PyG scatter_max -> 0 on empty

        # post_nn([x | agg * scalers]) as 13 split matmuls (no concatenate)
        x = x_ref[...]
        y = jnp.dot(x, wpost_ref[0], preferred_element_type=jnp.float32)
        idx = 1
        for scale in (None, amp, att):
            for blk in (mean, mn, mx, std):
                v = blk if scale is None else blk * scale
                y = y + jnp.dot(v, wpost_ref[idx], preferred_element_type=jnp.float32)
                idx += 1
        y = y + bpost_ref[...]
        h = jnp.dot(y, wlin_ref[...], preferred_element_type=jnp.float32) + blin_ref[...]

        bn = bn_ref[...]                  # (4, HP): gamma, beta, run_mean, run_var
        inv = bn[0:1, :] * jax.lax.rsqrt(bn[3:4, :] + 1e-5)
        o_ref[...] = jnp.maximum((h - bn[2:3, :]) * inv + bn[1:2, :], 0.0)


def pallas_pna_layer(g_tgt, g_src, scat, x, deg_stats, layer,
                     *, edge_tile, minmax_chunk, vmem_limit_bytes):
    e_pad, n = g_tgt.shape
    hp = x.shape[1]
    grid = (e_pad // edge_tile,)

    in_specs = [
        pl.BlockSpec((edge_tile, n), lambda k: (k, 0)),        # g_tgt edge tile
        pl.BlockSpec((edge_tile, n), lambda k: (k, 0)),        # g_src edge tile
        pl.BlockSpec((n, edge_tile), lambda k: (0, k)),        # scatter edge tile
        pl.BlockSpec((n, hp), lambda k: (0, 0)),               # x (resident)
        pl.BlockSpec(deg_stats.shape, lambda k: (0, 0)),       # degree stats
        pl.BlockSpec(layer["w_pre"].shape, lambda k: (0, 0, 0)),
        pl.BlockSpec(layer["b_pre"].shape, lambda k: (0, 0)),
        pl.BlockSpec(layer["w_post"].shape, lambda k: (0, 0, 0)),
        pl.BlockSpec(layer["b_post"].shape, lambda k: (0, 0)),
        pl.BlockSpec(layer["w_lin"].shape, lambda k: (0, 0)),
        pl.BlockSpec(layer["b_lin"].shape, lambda k: (0, 0)),
        pl.BlockSpec(layer["bn"].shape, lambda k: (0, 0)),
    ]
    return pl.pallas_call(
        functools.partial(_pna_layer_kernel, minmax_chunk=minmax_chunk),
        out_shape=jax.ShapeDtypeStruct((n, hp), jnp.float32),
        grid=grid,
        in_specs=in_specs,
        out_specs=pl.BlockSpec((n, hp), lambda k: (0, 0)),
        scratch_shapes=[pltpu.VMEM((n, hp), jnp.float32) for _ in range(4)],
        compiler_params=pltpu.CompilerParams(
            dimension_semantics=("arbitrary",),
            vmem_limit_bytes=vmem_limit_bytes),
    )(g_tgt, g_src, scat, x, deg_stats,
      layer["w_pre"], layer["b_pre"], layer["w_post"], layer["b_post"],
      layer["w_lin"], layer["b_lin"], layer["bn"])


# ---------------------------------------------------------------------------
# Fused global_add_pool + MLP (Linear(50,25) -> ReLU -> Dropout[id] -> Linear(25,1))
# ---------------------------------------------------------------------------
def _pool_mlp_kernel(p_ref, x_ref, w1_ref, b1_ref, w2_ref, b2_ref, o_ref):
    pooled = jnp.dot(p_ref[...], x_ref[...], preferred_element_type=jnp.float32)
    h = jnp.maximum(jnp.dot(pooled, w1_ref[...], preferred_element_type=jnp.float32)
                    + b1_ref[...], 0.0)
    # TODO(synk): Dropout(p=0.2) is identity in inference mode.
    o_ref[...] = jnp.dot(h, w2_ref[...], preferred_element_type=jnp.float32) + b2_ref[...]


def pallas_pool_mlp(pool, x, w1, b1, w2, b2):
    g = pool.shape[0]
    outp = w2.shape[1]
    return pl.pallas_call(
        _pool_mlp_kernel,
        out_shape=jax.ShapeDtypeStruct((g, outp), jnp.float32),
        in_specs=[_full_spec(pool.shape), _full_spec(x.shape),
                  _full_spec(w1.shape), _full_spec(b1.shape),
                  _full_spec(w2.shape), _full_spec(b2.shape)],
        out_specs=_full_spec((g, outp)),
    )(pool, x, w1, b1, w2, b2)


# ---------------------------------------------------------------------------
# Full forward pass (mirrors PNA.forward) — 5 pallas_calls total
# ---------------------------------------------------------------------------
def pna_forward(params, x, a_norm, g_tgt, g_src, scat, pool, deg_stats,
                *, edge_tile, minmax_chunk, vmem_limit_bytes):
    # conv1 = GCNConv(2, 50)
    x = pallas_gcn(a_norm, x, params["gcn_w"], params["gcn_b"])
    # 3x fused [PNAConv(50,50) -> BatchNorm(50) -> ReLU]
    for layer in params["layers"]:
        x = pallas_pna_layer(g_tgt, g_src, scat, x, deg_stats, layer,
                             edge_tile=edge_tile, minmax_chunk=minmax_chunk,
                             vmem_limit_bytes=vmem_limit_bytes)
    # global_add_pool + MLP fused; Flatten + lane un-padding done outside the kernel
    out = pallas_pool_mlp(pool, x, params["mlp_w1"], params["mlp_b1"],
                          params["mlp_w2"], params["mlp_b2"])
    return out[:, 0]


# ---------------------------------------------------------------------------
if __name__ == "__main__":
    key = jax.random.PRNGKey(0)

    num_graphs = 4
    nodes_per_graph = 32
    N = num_graphs * nodes_per_graph           # 128 nodes
    F_IN, H, H_MLP = 2, 50, 25
    EDGE_TILE = 128                            # lane-aligned edge tile
    MINMAX_CHUNK = 32                          # sub-chunk for masked min/max
    VMEM_LIMIT = 32 * 1024 * 1024              # explicit scoped-VMEM budget

    # Bidirectional ring inside each graph (every node has in-degree 2).
    src_list, tgt_list = [], []
    for g in range(num_graphs):
        base = g * nodes_per_graph
        for i in range(nodes_per_graph):
            j = (i + 1) % nodes_per_graph
            src_list += [base + i, base + j]
            tgt_list += [base + j, base + i]
    src = jnp.array(src_list, dtype=jnp.int32)
    tgt = jnp.array(tgt_list, dtype=jnp.int32)
    E = int(src.shape[0])                      # 256 edges
    batch = jnp.array([g for g in range(num_graphs) for _ in range(nodes_per_graph)],
                      dtype=jnp.int32)

    key, kx = jax.random.split(key)
    x_in = jax.random.normal(kx, (N, F_IN), dtype=jnp.float32)

    N_PAD = _round_up(N, 8)
    E_PAD = _round_up(E, EDGE_TILE)

    # ---- graph-structure glue (plain JAX, one-time preprocessing) ----
    g_src_f = jax.nn.one_hot(src, N, dtype=jnp.float32)        # (E, N) gather x_j
    g_tgt_f = jax.nn.one_hot(tgt, N, dtype=jnp.float32)        # (E, N) gather x_i
    g_src = _pad_to(g_src_f, (E_PAD, N_PAD)).astype(jnp.bfloat16)
    g_tgt = _pad_to(g_tgt_f, (E_PAD, N_PAD)).astype(jnp.bfloat16)
    scat = _pad_to(g_tgt_f.T, (N_PAD, E_PAD)).astype(jnp.bfloat16)   # (N, E) scatter
    pool = _pad_to(jax.nn.one_hot(batch, num_graphs, dtype=jnp.float32).T,
                   (num_graphs, N_PAD))                        # (G, N)

    x_p = _pad_to(x_in, (N_PAD, F_IN))

    # GCN normalized adjacency:  D^-1/2 (A + I) D^-1/2
    A = (jnp.zeros((N, N), jnp.float32).at[tgt, src].add(1.0)
         + jnp.eye(N, dtype=jnp.float32))
    deg_gcn = A.sum(axis=1)
    dinv = 1.0 / jnp.sqrt(deg_gcn)
    a_norm = _pad_to(dinv[:, None] * A * dinv[None, :], (N_PAD, N_PAD))

    # PNA degree statistics (hoisted out of the per-layer kernels).
    in_deg = g_tgt_f.sum(axis=0)                               # (N,) in-degree
    max_deg = int(jnp.max(in_deg))
    deg_hist = (jnp.zeros((max_deg + 1,), jnp.float32)
                .at[in_deg.astype(jnp.int32)].add(1.0))
    bins = jnp.arange(max_deg + 1, dtype=jnp.float32)
    avg_deg_log = float(jnp.sum(jnp.log(bins + 1.0) * deg_hist) / jnp.sum(deg_hist))

    deg_c = jnp.maximum(in_deg, 1.0)
    deg_stats = _pad_to(
        jnp.stack([in_deg, 1.0 / deg_c,
                   jnp.log(deg_c + 1.0) / avg_deg_log,
                   avg_deg_log / jnp.log(deg_c + 1.0)], axis=1),
        (N_PAD, 4))                                            # [deg, 1/deg, amp, att]

    # ---- deterministic parameter init (PyTorch layout, zero-padded to 128 lanes) ----
    def lin_init(k, fan_in, fan_out):
        kw, kb = jax.random.split(k)
        w = jax.random.normal(kw, (fan_in, fan_out), jnp.float32) / jnp.sqrt(float(fan_in))
        b = 0.01 * jax.random.normal(kb, (1, fan_out), jnp.float32)
        return w, b

    keys = jax.random.split(key, 16)
    gcn_w, gcn_b = lin_init(keys[0], F_IN, H)

    layers = []
    for li in range(3):
        k0, k1, k2, k3 = jax.random.split(keys[1 + li], 4)
        w_pre, b_pre = lin_init(k0, 2 * H, H)                   # pre_nn: Linear(100, 50)
        w_post, b_post = lin_init(k1, 13 * H, H)                # post_nn: Linear(650, 50)
        w_lin, b_lin = lin_init(k2, H, H)                       # lin: Linear(50, 50)
        kg, kbn = jax.random.split(k3)
        bn_gamma = 1.0 + 0.1 * jax.random.normal(kg, (1, H), jnp.float32)
        bn_beta = 0.1 * jax.random.normal(kbn, (1, H), jnp.float32)
        bn_mean = jnp.zeros((1, H), jnp.float32)
        bn_var = jnp.ones((1, H), jnp.float32)
        layers.append(dict(
            # pre_nn weights split into the [x_i | x_j] blocks (no in-kernel concat)
            w_pre=jnp.stack([_pad_to(w_pre[:H], (HP, HP)),
                             _pad_to(w_pre[H:], (HP, HP))]),
            b_pre=_pad_to(b_pre, (1, HP)),
            # post_nn weights split into [x | 12 aggregator*scaler] blocks
            w_post=jnp.stack([_pad_to(w_post[i * H:(i + 1) * H], (HP, HP))
                              for i in range(13)]),
            b_post=_pad_to(b_post, (1, HP)),
            w_lin=_pad_to(w_lin, (HP, HP)),
            b_lin=_pad_to(b_lin, (1, HP)),
            bn=jnp.concatenate([_pad_to(bn_gamma, (1, HP)),
                                _pad_to(bn_beta, (1, HP)),
                                _pad_to(bn_mean, (1, HP)),
                                _pad_to(bn_var, (1, HP), value=1.0)], axis=0),
        ))

    mlp_w1, mlp_b1 = lin_init(keys[10], H, H_MLP)
    mlp_w2, mlp_b2 = lin_init(keys[11], H_MLP, 1)

    params = dict(
        gcn_w=_pad_to(gcn_w, (F_IN, HP)), gcn_b=_pad_to(gcn_b, (1, HP)),
        layers=layers,
        mlp_w1=_pad_to(mlp_w1, (HP, MLPP)), mlp_b1=_pad_to(mlp_b1, (1, MLPP)),
        mlp_w2=_pad_to(mlp_w2, (MLPP, OUTP)), mlp_b2=_pad_to(mlp_b2, (1, OUTP)))

    out = pna_forward(params, x_p, a_norm, g_tgt, g_src, scat, pool, deg_stats,
                      edge_tile=EDGE_TILE, minmax_chunk=MINMAX_CHUNK,
                      vmem_limit_bytes=VMEM_LIMIT)
    out = jax.block_until_ready(out)
    assert out.shape == (num_graphs,) and out.dtype == jnp.float32
    assert bool(jnp.all(jnp.isfinite(out)))
    print("KERNEL_OK")
</pallas_src>

<mosaic_0001>
module attributes {stable_mosaic.version = 11 : i64} {
  func.func @_gcn_kernel(%arg0: memref<128x128xf32, #tpu.memory_space<vmem>>, %arg1: memref<128x2xf32, #tpu.memory_space<vmem>>, %arg2: memref<2x128xf32, #tpu.memory_space<vmem>>, %arg3: memref<1x128xf32, #tpu.memory_space<vmem>>, %arg4: memref<128x128xf32, #tpu.memory_space<vmem>>) attributes {dimension_semantics = [], scalar_prefetch = 0 : i64, scratch_operands = 0 : i64, tpu.core_type = #tpu.core_type<tc>} {
    %c0 = arith.constant 0 : index
    %c0_0 = arith.constant 0 : index
    %0 = vector.load %arg1[%c0, %c0_0] : memref<128x2xf32, #tpu.memory_space<vmem>>, vector<128x2xf32>
    %c0_1 = arith.constant 0 : index
    %c0_2 = arith.constant 0 : index
    %1 = vector.load %arg2[%c0_1, %c0_2] : memref<2x128xf32, #tpu.memory_space<vmem>>, vector<2x128xf32>
    %cst = arith.constant dense<0.000000e+00> : vector<128x128xf32>
    %2 = tpu.matmul %0, %1, %cst {dimension_numbers = #tpu.dot_dimension_numbers<[1], [0], [0], [1], [0, 0, 1, 1], [], []>} : vector<128x2xf32>, vector<2x128xf32>, vector<128x128xf32> -> vector<128x128xf32>
    %c0_3 = arith.constant 0 : index
    %c0_4 = arith.constant 0 : index
    %3 = vector.load %arg0[%c0_3, %c0_4] : memref<128x128xf32, #tpu.memory_space<vmem>>, vector<128x128xf32>
    %cst_5 = arith.constant dense<0.000000e+00> : vector<128x128xf32>
    %4 = tpu.matmul %3, %2, %cst_5 {dimension_numbers = #tpu.dot_dimension_numbers<[1], [0], [0], [1], [0, 0, 1, 1], [], []>} : vector<128x128xf32>, vector<128x128xf32>, vector<128x128xf32> -> vector<128x128xf32>
    %c0_6 = arith.constant 0 : index
    %c0_7 = arith.constant 0 : index
    %5 = vector.load %arg3[%c0_6, %c0_7] : memref<1x128xf32, #tpu.memory_space<vmem>>, vector<1x128xf32>
    %6 = vector.broadcast %5 : vector<1x128xf32> to vector<128x128xf32>
    %7 = arith.addf %4, %6 : vector<128x128xf32>
    %c0_8 = arith.constant 0 : index
    %c0_9 = arith.constant 0 : index
    %8 = vector.load %arg4[%c0_8, %c0_9] : memref<128x128xf32, #tpu.memory_space<vmem>>, vector<128x128xf32>
    tpu.vector_store %arg4[%c0_8, %c0_9], %7 {strides = array<i32>} : memref<128x128xf32, #tpu.memory_space<vmem>>, vector<128x128xf32>,
    return
  }
}

</mosaic_0001>

<llo_original>
// kernel: tpu_custom_call.1
$region0: #{tpu_custom_call.1}
  #allocation0 [shape = 'u32[]', space=smem, size = 0x4, offset = 0x4, fixed_abs, tag = 'smem constant byte address 0x4 - core index']
  #allocation1 [shape = 'u32[144,128]{1,0:T(1,128)}', space=vmem, size = 0x12000, scoped, tag = 'internal scratch']
  %s0 = inlined_call_operand.vmem [shape: f32[128,128], index: 0, kind: input, shape index: {}]
  %s1 = inlined_call_operand.vmem [shape: f32[128,2], index: 1, kind: input, shape index: {}]
  %s2 = inlined_call_operand.vmem [shape: f32[2,128], index: 2, kind: input, shape index: {}]
  %s3 = inlined_call_operand.vmem [shape: f32[1,128], index: 3, kind: input, shape index: {}]
  %s4 = inlined_call_operand.hbm [shape: f32[128,128], index: 4, kind: output, shape index: {}]
  %s5 = sld [smem:[#allocation0]]
  $region26: #{tpu_custom_call.1} parent=0
    _
  %s7 = ssub.s32 1, %s5
  %s8 = scalar_select 0, %s7, %s5
  $region1: #{tpu_custom_call.1} parent=0
    #allocation2 [shape = 'u8[65536]{0}', space=vmem, size = 0x10000, scoped, tag = 'output window, operand 0, single buffered']
    #allocation3 [shape = 's32[1]{0}', space=sflag, size = 0x4, scoped, tag = 'scoped memory for tpu_custom_call.1']
    %9 = vsyncpa [#allocation3], 0
    // Predicated region
    $region2: #{tpu_custom_call.1} parent=1 // pred_check
      _
    $region3: #{tpu_custom_call.1} parent=1 // pred_check_branch
      %11 = sbr.rel (0) target = $region5
    $region4: #{tpu_custom_call.1} parent=1 // pred_region
      _
    $region5: #{tpu_custom_call.1} parent=1 // pred_fallthru
      _
    // Predicated region
    $region6: #{tpu_custom_call.1} parent=1 // pred_check
      _
    $region7: #{tpu_custom_call.1} parent=1 // pred_check_branch
      %13 = sbr.rel (0) target = $region9
    $region8: #{tpu_custom_call.1} parent=1 // pred_region
      _
    $region9: #{tpu_custom_call.1} parent=1 // pred_fallthru
      _
    // Predicated region
    $region10: #{tpu_custom_call.1} parent=1 // pred_check
      _
    $region11: #{tpu_custom_call.1} parent=1 // pred_check_branch
      %15 = sbr.rel (0) target = $region13
    $region12: #{tpu_custom_call.1} parent=1 // pred_region
      _
    $region13: #{tpu_custom_call.1} parent=1 // pred_fallthru
      _
    // Predicated region
    $region14: #{tpu_custom_call.1} parent=1 // pred_check
      _
    $region15: #{tpu_custom_call.1} parent=1 // pred_check_branch
      %17 = sbr.rel (0) target = $region17
    $region16: #{tpu_custom_call.1} parent=1 // pred_region
      _
    $region17: #{tpu_custom_call.1} parent=1 // pred_fallthru
      _
    %v18 = vld [vmem:[%s1] sm:$0xff]
    %v19 = vld [vmem:[%s1 + $0x8] sm:$0xff]
    %v20 = vld [vmem:[%s1 + $0x10] sm:$0xff]
    %v21 = vld [vmem:[%s1 + $0x18] sm:$0xff]
    %v22 = vld [vmem:[%s1 + $0x20] sm:$0xff]
    %v23 = vld [vmem:[%s1 + $0x28] sm:$0xff]
    %v24 = vld [vmem:[%s1 + $0x30] sm:$0xff]
    %v25 = vld [vmem:[%s1 + $0x38] sm:$0xff]
    %v26 = vld [vmem:[%s1 + $0x40] sm:$0xff]
    %v27 = vld [vmem:[%s1 + $0x48] sm:$0xff]
    %v28 = vld [vmem:[%s1 + $0x50] sm:$0xff]
    %v29 = vld [vmem:[%s1 + $0x58] sm:$0xff]
    %v30 = vld [vmem:[%s1 + $0x60] sm:$0xff]
    %v31 = vld [vmem:[%s1 + $0x68] sm:$0xff]
    %v32 = vld [vmem:[%s1 + $0x70] sm:$0xff]
    %v33 = vld [vmem:[%s1 + $0x78] sm:$0xff]
    %v34 = vld [vmem:[%s2] sm:$0x3]
    %vm35 = vcmask 15360
    %v37 = vsel %vm35, %v18, 0
    %v40 = vsel %vm35, %v19, 0
    %v43 = vsel %vm35, %v20, 0
    %v46 = vsel %vm35, %v21, 0
    %v49 = vsel %vm35, %v22, 0
    %v52 = vsel %vm35, %v23, 0
    %v55 = vsel %vm35, %v24, 0
    %v58 = vsel %vm35, %v25, 0
    %v61 = vsel %vm35, %v26, 0
    %v64 = vsel %vm35, %v27, 0
    %v67 = vsel %vm35, %v28, 0
    %v70 = vsel %vm35, %v29, 0
    %v73 = vsel %vm35, %v30, 0
    %v76 = vsel %vm35, %v31, 0
    %v79 = vsel %vm35, %v32, 0
    %v82 = vsel %vm35, %v33, 0
    %vm84 = vcmask 1041408
    %v86 = vsel %vm84, %v34, 0
    %88 = vmatprep.subr.mxu0 0.0
    %89 = vmatpush1.msra.mxu0 %v86
    %90 = vmatprep.subr.mxu0 0.0
    %91 = vmatpush1.msra.mxu0 0.0
    %92 = vmatprep.subr.mxu0 0.0
    %93 = vmatpush1.msra.mxu0 0.0
    %94 = vmatprep.subr.mxu0 0.0
    %95 = vmatpush1.msra.mxu0 0.0
    %96 = vmatprep.subr.mxu0 0.0
    %97 = vmatpush1.msra.mxu0 0.0
    %98 = vmatprep.subr.mxu0 0.0
    %99 = vmatpush1.msra.mxu0 0.0
    %100 = vmatprep.subr.mxu0 0.0
    %101 = vmatpush1.msra.mxu0 0.0
    %102 = vmatprep.subr.mxu0 0.0
    %103 = vmatpush1.msra.mxu0 0.0
    %104 = vmatprep.subr.mxu0 0.0
    %105 = vmatpush1.msra.mxu0 0.0
    %106 = vmatprep.subr.mxu0 0.0
    %107 = vmatpush1.msra.mxu0 0.0
    %108 = vmatprep.subr.mxu0 0.0
    %109 = vmatpush1.msra.mxu0 0.0
    %110 = vmatprep.subr.mxu0 0.0
    %111 = vmatpush1.msra.mxu0 0.0
    %112 = vmatprep.subr.mxu0 0.0
    %113 = vmatpush1.msra.mxu0 0.0
    %114 = vmatprep.subr.mxu0 0.0
    %115 = vmatpush1.msra.mxu0 0.0
    %116 = vmatprep.subr.mxu0 0.0
    %117 = vmatpush1.msra.mxu0 0.0
    %118 = vmatprep.subr.mxu0 0.0
    %119 = vmatpush1.msra.mxu0 0.0
    %120 = vmatprep.subr.mxu0 0.0
    %121 = vmatpush1.msra.mxu0 0.0
    %122 = vmatprep.subr.mxu0 0.0
    %123 = vmatpush1.msra.mxu0 0.0
    %124 = vmatprep.subr.mxu0 0.0
    %125 = vmatpush1.msra.mxu0 0.0
    %126 = vmatprep.subr.mxu0 0.0
    %127 = vmatpush1.msra.mxu0 0.0
    %128 = vmatprep.subr.mxu0 0.0
    %129 = vmatpush1.msra.mxu0 0.0
    %130 = vmatprep.subr.mxu0 0.0
    %131 = vmatpush1.msra.mxu0 0.0
    %132 = vmatprep.subr.mxu0 0.0
    %133 = vmatpush1.msra.mxu0 0.0
    %134 = vmatprep.subr.mxu0 0.0
    %135 = vmatpush1.msra.mxu0 0.0
    %136 = vmatprep.subr.mxu0 0.0
    %137 = vmatpush1.msra.mxu0 0.0
    %138 = vmatprep.subr.mxu0 0.0
    %139 = vmatpush1.msra.mxu0 0.0
    %140 = vmatprep.subr.mxu0 0.0
    %141 = vmatpush1.msra.mxu0 0.0
    %142 = vmatprep.subr.mxu0 0.0
    %143 = vmatpush1.msra.mxu0 0.0
    %144 = vmatprep.subr.mxu0 0.0
    %145 = vmatpush1.msra.mxu0 0.0
    %146 = vmatprep.subr.mxu0 0.0
    %147 = vmatpush1.msra.mxu0 0.0
    %148 = vmatprep.subr.mxu0 0.0
    %149 = vmatpush1.msra.mxu0 0.0
    %150 = vmatprep.subr.mxu0 0.0
    %151 = vmatpush1.msra.mxu0 0.0
    %152 = vmatprep.mubr.f32.mxu0 0.0
    %153 = vmatmul.mubr.f32.gmra.mrb[0].mxu0 %v37
    %v154 = vpop.f32.mrb[0].mxu0
    %v155 = vadd.f32 0.0, %v154
    %v156 = vpop.f32.mrb[0].mxu0
    %157 = vmatprep.mubr.f32.mxu0 0.0
    %158 = vmatmul.mubr.f32.gmra.mrb[0].mxu0 %v40
    %v159 = vpop.f32.mrb[0].mxu0
    %v160 = vadd.f32 0.0, %v159
    %v161 = vpop.f32.mrb[0].mxu0
    %162 = vmatprep.mubr.f32.mxu0 0.0
    %163 = vmatmul.mubr.f32.gmra.mrb[0].mxu0 %v43
    %v164 = vpop.f32.mrb[0].mxu0
    %v165 = vadd.f32 0.0, %v164
    %v166 = vpop.f32.mrb[0].mxu0
    %167 = vmatprep.mubr.f32.mxu0 0.0
    %168 = vmatmul.mubr.f32.gmra.mrb[0].mxu0 %v46
    %v169 = vpop.f32.mrb[0].mxu0
    %v170 = vadd.f32 0.0, %v169
    %v171 = vpop.f32.mrb[0].mxu0
    %172 = vmatprep.mubr.f32.mxu0 0.0
    %173 = vmatmul.mubr.f32.gmra.mrb[0].mxu0 %v49
    %v174 = vpop.f32.mrb[0].mxu0
    %v175 = vadd.f32 0.0, %v174
    %v176 = vpop.f32.mrb[0].mxu0
    %177 = vmatprep.mubr.f32.mxu0 0.0
    %178 = vmatmul.mubr.f32.gmra.mrb[0].mxu0 %v52
    %v179 = vpop.f32.mrb[0].mxu0
    %v180 = vadd.f32 0.0, %v179
    %v181 = vpop.f32.mrb[0].mxu0
    %182 = vmatprep.mubr.f32.mxu0 0.0
    %183 = vmatmul.mubr.f32.gmra.mrb[0].mxu0 %v55
    %v184 = vpop.f32.mrb[0].mxu0
    %v185 = vadd.f32 0.0, %v184
    %v186 = vpop.f32.mrb[0].mxu0
    %187 = vmatprep.mubr.f32.mxu0 0.0
    %188 = vmatmul.mubr.f32.gmra.mrb[0].mxu0 %v58
    %v189 = vpop.f32.mrb[0].mxu0
    %v190 = vadd.f32 0.0, %v189
    %v191 = vpop.f32.mrb[0].mxu0
    %192 = vmatprep.mubr.f32.mxu0 0.0
    %193 = vmatmul.mubr.f32.gmra.mrb[0].mxu0 %v61
    %v194 = vpop.f32.mrb[0].mxu0
    %v195 = vadd.f32 0.0, %v194
    %v196 = vpop.f32.mrb[0].mxu0
    %197 = vmatprep.mubr.f32.mxu0 0.0
    %198 = vmatmul.mubr.f32.gmra.mrb[0].mxu0 %v64
    %v199 = vpop.f32.mrb[0].mxu0
    %v200 = vadd.f32 0.0, %v199
    %v201 = vpop.f32.mrb[0].mxu0
    %202 = vmatprep.mubr.f32.mxu0 0.0
    %203 = vmatmul.mubr.f32.gmra.mrb[0].mxu0 %v67
    %v204 = vpop.f32.mrb[0].mxu0
    %v205 = vadd.f32 0.0, %v204
    %v206 = vpop.f32.mrb[0].mxu0
    %207 = vmatprep.mubr.f32.mxu0 0.0
    %208 = vmatmul.mubr.f32.gmra.mrb[0].mxu0 %v70
    %v209 = vpop.f32.mrb[0].mxu0
    %v210 = vadd.f32 0.0, %v209
    %v211 = vpop.f32.mrb[0].mxu0
    %212 = vmatprep.mubr.f32.mxu0 0.0
    %213 = vmatmul.mubr.f32.gmra.mrb[0].mxu0 %v73
    %v214 = vpop.f32.mrb[0].mxu0
    %v215 = vadd.f32 0.0, %v214
    %v216 = vpop.f32.mrb[0].mxu0
    %217 = vmatprep.mubr.f32.mxu0 0.0
    %218 = vmatmul.mubr.f32.gmra.mrb[0].mxu0 %v76
    %v219 = vpop.f32.mrb[0].mxu0
    %v220 = vadd.f32 0.0, %v219
    %v221 = vpop.f32.mrb[0].mxu0
    %222 = vmatprep.mubr.f32.mxu0 0.0
    %223 = vmatmul.mubr.f32.gmra.mrb[0].mxu0 %v79
    %v224 = vpop.f32.mrb[0].mxu0
    %v225 = vadd.f32 0.0, %v224
    %v226 = vpop.f32.mrb[0].mxu0
    %227 = vmatprep.mubr.f32.mxu0 0.0
    %228 = vmatmul.mubr.f32.gmra.mrb[0].mxu0 %v82
    %v229 = vpop.f32.mrb[0].mxu0
    %v230 = vadd.f32 0.0, %v229
    %v231 = vpop.f32.mrb[0].mxu0
    %232 = vdwg.mxu0
    %v233 = vld [vmem:[%s0] sm:$0xff]
    %v234 = vld [vmem:[%s0 + $0x8] sm:$0xff]
    %v235 = vld [vmem:[%s0 + $0x10] sm:$0xff]
    %v236 = vld [vmem:[%s0 + $0x18] sm:$0xff]
    %v237 = vld [vmem:[%s0 + $0x20] sm:$0xff]
    %v238 = vld [vmem:[%s0 + $0x28] sm:$0xff]
    %v239 = vld [vmem:[%s0 + $0x30] sm:$0xff]
    %v240 = vld [vmem:[%s0 + $0x38] sm:$0xff]
    %v241 = vld [vmem:[%s0 + $0x40] sm:$0xff]
    %v242 = vld [vmem:[%s0 + $0x48] sm:$0xff]
    %v243 = vld [vmem:[%s0 + $0x50] sm:$0xff]
    %v244 = vld [vmem:[%s0 + $0x58] sm:$0xff]
    %v245 = vld [vmem:[%s0 + $0x60] sm:$0xff]
    %v246 = vld [vmem:[%s0 + $0x68] sm:$0xff]
    %v247 = vld [vmem:[%s0 + $0x70] sm:$0xff]
    %v248 = vld [vmem:[%s0 + $0x78] sm:$0xff]
    %v249 = vld [vmem:[%s3] sm:$0x1]
    %v251 = vlaneseq
    %v252 = vshrl.u32 %v251, 7
    %v253 = vsub.s32 0, %v252
    %v254 = vrot.slane %v249, %v253
    %256 = vmatprep.subr.mxu0 0.0
    %257 = vmatpush1.msra.mxu0 %v155
    %258 = vmatprep.subr.mxu0 0.0
    %259 = vmatpush1.msra.mxu0 %v160
    %260 = vmatprep.subr.mxu0 0.0
    %261 = vmatpush1.msra.mxu0 %v165
    %262 = vmatprep.subr.mxu0 0.0
    %263 = vmatpush1.msra.mxu0 %v170
    %264 = vmatprep.subr.mxu0 0.0
    %265 = vmatpush1.msra.mxu0 %v175
    %266 = vmatprep.subr.mxu0 0.0
    %267 = vmatpush1.msra.mxu0 %v180
    %268 = vmatprep.subr.mxu0 0.0
    %269 = vmatpush1.msra.mxu0 %v185
    %270 = vmatprep.subr.mxu0 0.0
    %271 = vmatpush1.msra.mxu0 %v190
    %272 = vmatprep.subr.mxu0 0.0
    %273 = vmatpush1.msra.mxu0 %v195
    %274 = vmatprep.subr.mxu0 0.0
    %275 = vmatpush1.msra.mxu0 %v200
    %276 = vmatprep.subr.mxu0 0.0
    %277 = vmatpush1.msra.mxu0 %v205
    %278 = vmatprep.subr.mxu0 0.0
    %279 = vmatpush1.msra.mxu0 %v210
    %280 = vmatprep.subr.mxu0 0.0
    %281 = vmatpush1.msra.mxu0 %v215
    %282 = vmatprep.subr.mxu0 0.0
    %283 = vmatpush1.msra.mxu0 %v220
    %284 = vmatprep.subr.mxu0 0.0
    %285 = vmatpush1.msra.mxu0 %v225
    %286 = vmatprep.subr.mxu0 0.0
    %287 = vmatpush1.msra.mxu0 %v230
    %288 = vmatprep.subr.mxu0 0.0
    %289 = vmatpush1.msra.mxu0 0.0
    %290 = vmatprep.subr.mxu0 0.0
    %291 = vmatpush1.msra.mxu0 0.0
    %292 = vmatprep.subr.mxu0 0.0
    %293 = vmatpush1.msra.mxu0 0.0
    %294 = vmatprep.subr.mxu0 0.0
    %295 = vmatpush1.msra.mxu0 0.0
    %296 = vmatprep.subr.mxu0 0.0
    %297 = vmatpush1.msra.mxu0 0.0
    %298 = vmatprep.subr.mxu0 0.0
    %299 = vmatpush1.msra.mxu0 0.0
    %300 = vmatprep.subr.mxu0 0.0
    %301 = vmatpush1.msra.mxu0 0.0
    %302 = vmatprep.subr.mxu0 0.0
    %303 = vmatpush1.msra.mxu0 0.0
    %304 = vmatprep.subr.mxu0 0.0
    %305 = vmatpush1.msra.mxu0 0.0
    %306 = vmatprep.subr.mxu0 0.0
    %307 = vmatpush1.msra.mxu0 0.0
    %308 = vmatprep.subr.mxu0 0.0
    %309 = vmatpush1.msra.mxu0 0.0
    %310 = vmatprep.subr.mxu0 0.0
    %311 = vmatpush1.msra.mxu0 0.0
    %312 = vmatprep.subr.mxu0 0.0
    %313 = vmatpush1.msra.mxu0 0.0
    %314 = vmatprep.subr.mxu0 0.0
    %315 = vmatpush1.msra.mxu0 0.0
    %316 = vmatprep.subr.mxu0 0.0
    %317 = vmatpush1.msra.mxu0 0.0
    %318 = vmatprep.subr.mxu0 0.0
    %319 = vmatpush1.msra.mxu0 0.0
    %320 = vmatprep.mubr.f32.mxu0 0.0
    %321 = vmatmul.mubr.f32.gmra.mrb[0].mxu0 %v233
    %v322 = vpop.f32.mrb[0].mxu0
    %v323 = vadd.f32 %v254, %v322
    %v324 = vpop.f32.mrb[0].mxu0
    %325 = vmatprep.mubr.f32.mxu0 0.0
    %326 = vmatmul.mubr.f32.gmra.mrb[0].mxu0 %v234
    %v327 = vpop.f32.mrb[0].mxu0
    %v328 = vadd.f32 %v254, %v327
    %v329 = vpop.f32.mrb[0].mxu0
    %330 = vmatprep.mubr.f32.mxu0 0.0
    %331 = vmatmul.mubr.f32.gmra.mrb[0].mxu0 %v235
    %v332 = vpop.f32.mrb[0].mxu0
    %v333 = vadd.f32 %v254, %v332
    %v334 = vpop.f32.mrb[0].mxu0
    %335 = vmatprep.mubr.f32.mxu0 0.0
    %336 = vmatmul.mubr.f32.gmra.mrb[0].mxu0 %v236
    %v337 = vpop.f32.mrb[0].mxu0
    %v338 = vadd.f32 %v254, %v337
    %v339 = vpop.f32.mrb[0].mxu0
    %340 = vmatprep.mubr.f32.mxu0 0.0
    %341 = vmatmul.mubr.f32.gmra.mrb[0].mxu0 %v237
    %v342 = vpop.f32.mrb[0].mxu0
    %v343 = vadd.f32 %v254, %v342
    %v344 = vpop.f32.mrb[0].mxu0
    %345 = vmatprep.mubr.f32.mxu0 0.0
    %346 = vmatmul.mubr.f32.gmra.mrb[0].mxu0 %v238
    %v347 = vpop.f32.mrb[0].mxu0
    %v348 = vadd.f32 %v254, %v347
    %v349 = vpop.f32.mrb[0].mxu0
    %350 = vmatprep.mubr.f32.mxu0 0.0
    %351 = vmatmul.mubr.f32.gmra.mrb[0].mxu0 %v239
    %v352 = vpop.f32.mrb[0].mxu0
    %v353 = vadd.f32 %v254, %v352
    %v354 = vpop.f32.mrb[0].mxu0
    %355 = vmatprep.mubr.f32.mxu0 0.0
    %356 = vmatmul.mubr.f32.gmra.mrb[0].mxu0 %v240
    %v357 = vpop.f32.mrb[0].mxu0
    %v358 = vadd.f32 %v254, %v357
    %v359 = vpop.f32.mrb[0].mxu0
    %360 = vmatprep.mubr.f32.mxu0 0.0
    %361 = vmatmul.mubr.f32.gmra.mrb[0].mxu0 %v241
    %v362 = vpop.f32.mrb[0].mxu0
    %v363 = vadd.f32 %v254, %v362
    %v364 = vpop.f32.mrb[0].mxu0
    %365 = vmatprep.mubr.f32.mxu0 0.0
    %366 = vmatmul.mubr.f32.gmra.mrb[0].mxu0 %v242
    %v367 = vpop.f32.mrb[0].mxu0
    %v368 = vadd.f32 %v254, %v367
    %v369 = vpop.f32.mrb[0].mxu0
    %370 = vmatprep.mubr.f32.mxu0 0.0
    %371 = vmatmul.mubr.f32.gmra.mrb[0].mxu0 %v243
    %v372 = vpop.f32.mrb[0].mxu0
    %v373 = vadd.f32 %v254, %v372
    %v374 = vpop.f32.mrb[0].mxu0
    %375 = vmatprep.mubr.f32.mxu0 0.0
    %376 = vmatmul.mubr.f32.gmra.mrb[0].mxu0 %v244
    %v377 = vpop.f32.mrb[0].mxu0
    %v378 = vadd.f32 %v254, %v377
    %v379 = vpop.f32.mrb[0].mxu0
    %380 = vmatprep.mubr.f32.mxu0 0.0
    %381 = vmatmul.mubr.f32.gmra.mrb[0].mxu0 %v245
    %v382 = vpop.f32.mrb[0].mxu0
    %v383 = vadd.f32 %v254, %v382
    %v384 = vpop.f32.mrb[0].mxu0
    %385 = vmatprep.mubr.f32.mxu0 0.0
    %386 = vmatmul.mubr.f32.gmra.mrb[0].mxu0 %v246
    %v387 = vpop.f32.mrb[0].mxu0
    %v388 = vadd.f32 %v254, %v387
    %v389 = vpop.f32.mrb[0].mxu0
    %390 = vmatprep.mubr.f32.mxu0 0.0
    %391 = vmatmul.mubr.f32.gmra.mrb[0].mxu0 %v247
    %v392 = vpop.f32.mrb[0].mxu0
    %v393 = vadd.f32 %v254, %v392
    %v394 = vpop.f32.mrb[0].mxu0
    %395 = vmatprep.mubr.f32.mxu0 0.0
    %396 = vmatmul.mubr.f32.gmra.mrb[0].mxu0 %v248
    %v397 = vpop.f32.mrb[0].mxu0
    %v398 = vadd.f32 %v254, %v397
    %v399 = vpop.f32.mrb[0].mxu0
    %400 = vdwg.mxu0
    %401 = vst [vmem:[#allocation2] sm:$0xff] %v323
    %402 = vst [vmem:[#allocation2 + $0x8] sm:$0xff] %v328
    %403 = vst [vmem:[#allocation2 + $0x10] sm:$0xff] %v333
    %404 = vst [vmem:[#allocation2 + $0x18] sm:$0xff] %v338
    %405 = vst [vmem:[#allocation2 + $0x20] sm:$0xff] %v343
    %406 = vst [vmem:[#allocation2 + $0x28] sm:$0xff] %v348
    %407 = vst [vmem:[#allocation2 + $0x30] sm:$0xff] %v353
    %408 = vst [vmem:[#allocation2 + $0x38] sm:$0xff] %v358
    %409 = vst [vmem:[#allocation2 + $0x40] sm:$0xff] %v363
    %410 = vst [vmem:[#allocation2 + $0x48] sm:$0xff] %v368
    %411 = vst [vmem:[#allocation2 + $0x50] sm:$0xff] %v373
    %412 = vst [vmem:[#allocation2 + $0x58] sm:$0xff] %v378
    %413 = vst [vmem:[#allocation2 + $0x60] sm:$0xff] %v383
    %414 = vst [vmem:[#allocation2 + $0x68] sm:$0xff] %v388
    %415 = vst [vmem:[#allocation2 + $0x70] sm:$0xff] %v393
    %416 = vst [vmem:[#allocation2 + $0x78] sm:$0xff] %v398
    // Predicated region
    $region18: #{tpu_custom_call.1} parent=1 // pred_check
      _
    $region19: #{tpu_custom_call.1} parent=1 // pred_check_branch
      %418 = sbr.rel (0) target = $region21
    $region20: #{tpu_custom_call.1} parent=1 // pred_region
      %s420 = ssub.s32 2048, 2048
      %421 = vsyncadd [#allocation3], %s420
      %s422 = sshll.u32 [#allocation2], 4
      %s423 = int_to_ptr.vmem [resolvable:$true] %s422
      %428 = dma.vmem_to_hbm [thread:$0]  %s423, 2048, %s4, [#allocation3], 128, 128, 8
    $region21: #{tpu_custom_call.1} parent=1 // pred_fallthru
      _
    // Predicated region
    $region22: #{tpu_custom_call.1} parent=1 // pred_check
      _
    $region23: #{tpu_custom_call.1} parent=1 // pred_check_branch
      %430 = sbr.rel (0) target = $region25
    $region24: #{tpu_custom_call.1} parent=1 // pred_region
      %431 = dma.done [#allocation3], 2048
    $region25: #{tpu_custom_call.1} parent=1 // pred_fallthru
      _
    %432 = vsyncpa [#allocation3], 1

</llo_original>
